<compile_context>
chip_gen: v6e
topology: v6e:2x2x1
jax: 0.10.0
libtpu: 0.0.40
codegen_flags: <defaults>
</compile_context>

<pallas_src>
import jax
import jax.numpy as jnp
from jax import lax
from jax.experimental import pallas as pl
from jax.experimental.pallas import tpu as pltpu


# ----------------------------------------------------------------------------
# helpers
# ----------------------------------------------------------------------------
def _round_up(x, m):
    return ((x + m - 1) // m) * m


def _vmem_limit_bytes():
    """Per-generation scoped-VMEM limit: half of physical VMEM, capped."""
    cap = 128 * 1024 * 1024
    try:
        info = pltpu.get_tpu_info()
        cap = int(getattr(info, "vmem_capacity_bytes", cap) or cap)
    except Exception:
        pass
    return int(min(max(cap // 2, 16 * 1024 * 1024), 96 * 1024 * 1024))


_COMPILER_PARAMS = pltpu.CompilerParams(
    dimension_semantics=("parallel", "parallel"),   # (batch, spatial tiles)
    vmem_limit_bytes=_vmem_limit_bytes(),
)


def _choose_spatial_tile(hw, n_batch, max_lanes=512):
    """Spatial (lane) tile: multiple of 128 (or full HW), >=2 grid steps."""
    if hw <= 128:
        return hw                       # full-extent block (allowed)
    t = min(max_lanes, hw)
    t = (t // 128) * 128
    if n_batch == 1 and t >= hw:
        # keep >=2 grid steps so both v7x TensorCores get work
        t = max(128, ((hw // 2) // 128) * 128)
    return t


# ----------------------------------------------------------------------------
# Kernel 1 (eval path): channel-major pointwise conv  out = W^T @ x + b
#   x_ref  : (C,  thw)   input dtype (cast to weight dtype in-kernel)
#   wt_ref : (Cp, C)     bf16 (pre-packed, transposed, padded)
#   b_ref  : (Cp, 1)     f32
#   out    : (Cp, thw)
# ----------------------------------------------------------------------------
def _pointwise_conv_cm_kernel(x_ref, wt_ref, b_ref, out_ref):
    x = x_ref[...].astype(wt_ref.dtype)
    out_ref[...] = (
        jnp.dot(wt_ref[...], x, preferred_element_type=jnp.float32)
        + b_ref[...]
    ).astype(out_ref.dtype)


def pointwise_conv_cm(x_chw, wt, b, *, thw, out_dtype):
    N, C, HW = x_chw.shape
    Cp = wt.shape[0]
    grid = (N, pl.cdiv(HW, thw))
    # TODO(synk): pipeline_mode=pl.Buffered(1) on wt/b (constant index_map)
    # would halve their resident VMEM on v7x once single-buffer pipeline_mode
    # support is confirmed on the running JAX version.
    return pl.pallas_call(
        _pointwise_conv_cm_kernel,
        out_shape=jax.ShapeDtypeStruct((N, Cp, HW), out_dtype),
        grid_spec=pltpu.PrefetchScalarGridSpec(
            num_scalar_prefetch=0,
            grid=grid,
            in_specs=[
                pl.BlockSpec((None, C, thw), lambda n, s: (n, 0, s)),
                pl.BlockSpec((Cp, C), lambda n, s: (0, 0)),
                pl.BlockSpec((Cp, 1), lambda n, s: (0, 0)),
            ],
            out_specs=pl.BlockSpec((None, Cp, thw), lambda n, s: (n, 0, s)),
        ),
        compiler_params=_COMPILER_PARAMS,
    )(x_chw, wt, b)


# ----------------------------------------------------------------------------
# Kernel 2 (training path): fused dual conv + DropBlock mix (channel-major).
#   z = [W_l3^T ; W_pre^T] @ x + [b_l3 ; b_pre]      (one wide MXU dot)
#   y, o4 = sublane-split of z (split at Cp, a multiple of 8 -> tile-aligned)
#   out = s*o4 + a*(y - o4)        with a = scale*block_mask (precomputed)
# ----------------------------------------------------------------------------
def _fused_conv_dropblock_cm_kernel(x_ref, wt_ref, b_ref, amask_ref, scale_ref,
                                    out_ref):
    cp = out_ref.shape[0]
    x = x_ref[...].astype(wt_ref.dtype)                       # (C, thw) bf16
    z = (jnp.dot(wt_ref[...], x, preferred_element_type=jnp.float32)
         + b_ref[...])                                        # (2Cp, thw) f32
    y = z[:cp]                       # layer3(x)
    o4 = z[cp:]                      # premodel.layer3(x)
    a = amask_ref[...]               # (1, thw) = scale * block_mask
    s = scale_ref[0, 0]              # scalar in SMEM
    out_ref[...] = (s * o4 + a * (y - o4)).astype(out_ref.dtype)


def fused_conv_dropblock_cm(x_chw, wt_cat, b_cat, a_mask, scale_11, *, thw,
                            out_dtype):
    N, C, HW = x_chw.shape
    C2 = wt_cat.shape[0]
    Cp = C2 // 2
    grid = (N, pl.cdiv(HW, thw))
    return pl.pallas_call(
        _fused_conv_dropblock_cm_kernel,
        out_shape=jax.ShapeDtypeStruct((N, Cp, HW), out_dtype),
        grid_spec=pltpu.PrefetchScalarGridSpec(
            num_scalar_prefetch=0,
            grid=grid,
            in_specs=[
                pl.BlockSpec((None, C, thw), lambda n, s: (n, 0, s)),
                pl.BlockSpec((C2, C), lambda n, s: (0, 0)),
                pl.BlockSpec((C2, 1), lambda n, s: (0, 0)),
                pl.BlockSpec((None, 1, thw), lambda n, s: (n, 0, s)),
                pl.BlockSpec(memory_space=pltpu.MemorySpace.SMEM),
            ],
            out_specs=pl.BlockSpec((None, Cp, thw), lambda n, s: (n, 0, s)),
        ),
        compiler_params=_COMPILER_PARAMS,
    )(x_chw, wt_cat, b_cat, a_mask, scale_11)


# ----------------------------------------------------------------------------
# Weight pre-packing (do ONCE, reuse across forwards).
# ----------------------------------------------------------------------------
def pack_params(params, matmul_dtype=jnp.bfloat16):
    """Transpose, pad Cout to a multiple of 8, concatenate, cast to bf16."""
    w_l3, w_pre = params["w_layer3"], params["w_pre"]      # (C_in, C_out)
    b_l3, b_pre = params["b_layer3"], params["b_pre"]      # (1, C_out)
    c_out = w_l3.shape[1]
    c_pad = _round_up(c_out, 8)

    def pack_w(w):       # (C_in, C_out) -> (c_pad, C_in)
        wt = jnp.transpose(w)
        return jnp.pad(wt, ((0, c_pad - c_out), (0, 0))).astype(matmul_dtype)

    def pack_b(b):       # (1, C_out) -> (c_pad, 1)
        bt = b.reshape(-1, 1)
        return jnp.pad(bt, ((0, c_pad - c_out), (0, 0))).astype(jnp.float32)

    wt_l3 = pack_w(w_l3)
    b_l3p = pack_b(b_l3)
    return {
        "wt_l3": wt_l3,
        "b_l3": b_l3p,
        "wt_cat": jnp.concatenate([wt_l3, pack_w(w_pre)], axis=0),
        "b_cat": jnp.concatenate([b_l3p, pack_b(b_pre)], axis=0),
        "c_out": c_out,
        "c_pad": c_pad,
    }


# ----------------------------------------------------------------------------
# Block-mask construction (replicates F.max_pool2d semantics). Stays in XLA:
# it touches only (N, H, W), ~1/C of the activation traffic.
# ----------------------------------------------------------------------------
def _compute_block_mask(mask, block_size):
    # mask: (N, H, W) float32 of {0, 1}
    pad = block_size // 2
    pooled = lax.reduce_window(
        mask, -jnp.inf, lax.max,
        window_dimensions=(1, block_size, block_size),
        window_strides=(1, 1, 1),
        padding=((0, 0), (pad, pad), (pad, pad)))
    if block_size % 2 == 0:
        pooled = pooled[:, :-1, :-1]
    return 1.0 - pooled


# ----------------------------------------------------------------------------
# Module forward
# ----------------------------------------------------------------------------
def transblock_layer3_forward(x_nchw, packed, *, drop_prob, block_size,
                              training, rng_key, spatial_tile=512,
                              out_dtype=None):
    N, C, H, W = x_nchw.shape
    HW = H * W
    Cout, Cp = packed["c_out"], packed["c_pad"]
    out_dtype = x_nchw.dtype if out_dtype is None else out_dtype
    thw = _choose_spatial_tile(HW, N, max_lanes=spatial_tile)

    # Channel-major view: free reshape, no transpose, no padding copy.
    x_chw = x_nchw.reshape(N, C, HW)

    if (not training) or drop_prob == 0.0:
        # Eval path: only layer3(x); premodel matmul skipped entirely.
        out_cm = pointwise_conv_cm(x_chw, packed["wt_l3"], packed["b_l3"],
                                   thw=thw, out_dtype=out_dtype)
        return out_cm[:, :Cout, :].reshape(N, Cout, H, W)

    # Training / DropBlock path (deterministic RNG supplied by caller).
    # TODO(synk): the original nested numpy loop in the reference forward is
    # internally inconsistent (unpacks a 2-D slice into 4 dims); we implement
    # the intended select-by-block-mask semantics instead.
    gamma = drop_prob / (block_size ** 2)
    mask = (jax.random.uniform(rng_key, (N, H, W)) < gamma).astype(jnp.float32)
    block_mask = _compute_block_mask(mask, block_size)            # (N, H, W)
    # Intentional deviation from the reference: guard against sum()==0 (the
    # reference would produce inf/NaN when every location is dropped).
    scale = (jnp.float32(block_mask.size)
             / jnp.maximum(jnp.sum(block_mask), 1.0))
    a_mask = (scale * block_mask).reshape(N, 1, HW).astype(jnp.float32)
    scale_11 = scale.reshape(1, 1).astype(jnp.float32)

    out_cm = fused_conv_dropblock_cm(
        x_chw, packed["wt_cat"], packed["b_cat"], a_mask, scale_11,
        thw=thw, out_dtype=out_dtype)
    return out_cm[:, :Cout, :].reshape(N, Cout, H, W)


# ----------------------------------------------------------------------------
# Deterministic parameter init + demo
# ----------------------------------------------------------------------------
def make_params(C, key):
    k1, k2 = jax.random.split(key)
    return {
        "w_layer3": (0.02 * jax.random.normal(k1, (C, C))).astype(jnp.float32),
        "b_layer3": jnp.zeros((1, C), jnp.float32),
        "w_pre": (0.02 * jax.random.normal(k2, (C, C))).astype(jnp.float32),
        "b_pre": jnp.zeros((1, C), jnp.float32),
    }


if __name__ == "__main__":
    key = jax.random.PRNGKey(0)
    k_x, k_p, k_drop = jax.random.split(key, 3)

    N, C, H, W = 2, 32, 16, 16
    x = jax.random.normal(k_x, (N, C, H, W), dtype=jnp.float32)
    params = make_params(C, k_p)

    # Pre-pack weights ONCE (amortized across all forwards).
    packed = pack_params(params)
    jax.block_until_ready(packed["wt_cat"])

    drop_prob, block_size = 0.3, 3

    # eval / drop_prob==0 path: returns layer3(x) only (single-weight kernel)
    out_eval = transblock_layer3_forward(
        x, packed, drop_prob=drop_prob, block_size=block_size,
        training=False, rng_key=k_drop)

    # training path: fused dual-conv + DropBlock mix in one pallas_call
    out_train = transblock_layer3_forward(
        x, packed, drop_prob=drop_prob, block_size=block_size,
        training=True, rng_key=k_drop)

    jax.block_until_ready(out_eval)
    jax.block_until_ready(out_train)
    assert out_eval.shape == (N, C, H, W)
    assert out_train.shape == (N, C, H, W)
    assert bool(jnp.all(jnp.isfinite(out_train)))
    print("KERNEL_OK")
</pallas_src>

<mosaic_0001>
module attributes {stable_mosaic.version = 11 : i64} {
  func.func @_pointwise_conv_cm_kernel(%arg0: i32, %arg1: i32, %arg2: memref<1x32x256xf32, #tpu.memory_space<vmem>>, %arg3: memref<32x32xbf16, #tpu.memory_space<vmem>>, %arg4: memref<32x1xf32, #tpu.memory_space<vmem>>, %arg5: memref<1x32x256xf32, #tpu.memory_space<vmem>>) attributes {dimension_semantics = [#tpu.dimension_semantics<parallel>, #tpu.dimension_semantics<parallel>], iteration_bounds = array<i64: 2, 1>, scalar_prefetch = 0 : i64, scratch_operands = 0 : i64, tpu.core_type = #tpu.core_type<tc>, window_params = [{transform_indices = @transform_0, window_bounds = array<i64: 1, 32, 256>}, {pipeline_mode = #tpu.pipeline_mode<synchronous>, transform_indices = @transform_1, window_bounds = array<i64: 32, 32>}, {pipeline_mode = #tpu.pipeline_mode<synchronous>, transform_indices = @transform_2, window_bounds = array<i64: 32, 1>}, {transform_indices = @transform_3, window_bounds = array<i64: 1, 32, 256>}]} {
    %c0 = arith.constant 0 : index
    %c0_0 = arith.constant 0 : index
    %c0_1 = arith.constant 0 : index
    %0 = vector.load %arg2[%c0, %c0_0, %c0_1] : memref<1x32x256xf32, #tpu.memory_space<vmem>>, vector<1x32x256xf32>
    %1 = vector.shape_cast %0 : vector<1x32x256xf32> to vector<32x256xf32>
    %2 = arith.truncf %1 : vector<32x256xf32> to vector<32x256xbf16>
    %c0_2 = arith.constant 0 : index
    %c0_3 = arith.constant 0 : index
    %3 = vector.load %arg3[%c0_2, %c0_3] : memref<32x32xbf16, #tpu.memory_space<vmem>>, vector<32x32xbf16>
    %cst = arith.constant dense<0.000000e+00> : vector<32x256xf32>
    %4 = tpu.matmul %3, %2, %cst {dimension_numbers = #tpu.dot_dimension_numbers<[1], [0], [0], [1], [0, 0, 1, 1], [], []>} : vector<32x32xbf16>, vector<32x256xbf16>, vector<32x256xf32> -> vector<32x256xf32>
    %c0_4 = arith.constant 0 : index
    %c0_5 = arith.constant 0 : index
    %5 = vector.load %arg4[%c0_4, %c0_5] : memref<32x1xf32, #tpu.memory_space<vmem>>, vector<32x1xf32>
    %6 = vector.broadcast %5 : vector<32x1xf32> to vector<32x256xf32>
    %7 = arith.addf %4, %6 : vector<32x256xf32>
    %c0_6 = arith.constant 0 : index
    %c0_7 = arith.constant 0 : index
    %c0_8 = arith.constant 0 : index
    %8 = vector.load %arg5[%c0_6, %c0_7, %c0_8] : memref<1x32x256xf32, #tpu.memory_space<vmem>>, vector<1x32x256xf32>
    %9 = vector.shape_cast %8 : vector<1x32x256xf32> to vector<32x256xf32>
    %10 = vector.shape_cast %7 : vector<32x256xf32> to vector<1x32x256xf32>
    tpu.vector_store %arg5[%c0_6, %c0_7, %c0_8], %10 {strides = array<i32>} : memref<1x32x256xf32, #tpu.memory_space<vmem>>, vector<1x32x256xf32>,
    return
  }
  func.func @transform_0(%arg0: i32, %arg1: i32) -> (i32, i32, i32) {
    %c0_i32 = arith.constant 0 : i32
    %c0_i32_0 = arith.constant 0 : i32
    return %arg0, %c0_i32, %arg1 : i32, i32, i32
  }
  func.func @transform_1(%arg0: i32, %arg1: i32) -> (i32, i32) {
    %c0_i32 = arith.constant 0 : i32
    %c0_i32_0 = arith.constant 0 : i32
    %c0_i32_1 = arith.constant 0 : i32
    return %c0_i32, %c0_i32_0 : i32, i32
  }
  func.func @transform_2(%arg0: i32, %arg1: i32) -> (i32, i32) {
    %c0_i32 = arith.constant 0 : i32
    %c0_i32_0 = arith.constant 0 : i32
    %c0_i32_1 = arith.constant 0 : i32
    return %c0_i32, %c0_i32_0 : i32, i32
  }
  func.func @transform_3(%arg0: i32, %arg1: i32) -> (i32, i32, i32) {
    %c0_i32 = arith.constant 0 : i32
    %c0_i32_0 = arith.constant 0 : i32
    return %arg0, %c0_i32, %arg1 : i32, i32, i32
  }
}

</mosaic_0001>

<llo_original>
// kernel: tpu_custom_call.1
$region0: #{tpu_custom_call.1}
  #allocation0 [shape = 'u32[]', space=smem, size = 0x4, offset = 0x4, fixed_abs, tag = 'smem constant byte address 0x4 - core index']
  #allocation1 [shape = 'u32[144,128]{1,0:T(1,128)}', space=vmem, size = 0x12000, scoped, tag = 'internal scratch']
  %s0 = inlined_call_operand.hbm [shape: f32[2,32,256], index: 0, kind: input, shape index: {}]
  %s1 = inlined_call_operand.vmem [shape: bf16[32,32], index: 1, kind: input, shape index: {}]
  %s2 = inlined_call_operand.vmem [shape: f32[32,1], index: 2, kind: input, shape index: {}]
  %s3 = inlined_call_operand.hbm [shape: f32[2,32,256], index: 3, kind: output, shape index: {}]
  %s4 = sld [smem:[#allocation0]]
  $region49: #{tpu_custom_call.1} parent=0
    _
  %s6 = ssub.s32 1, %s4
  %s7 = scalar_select 0, %s6, %s4
  $region1: #{tpu_custom_call.1} parent=0
    #allocation2 [shape = 'u8[65536]{0}', space=vmem, size = 0x10000, scoped, tag = 'input window, operand 0']
    #allocation3 [shape = 's32[2]{0}', space=sflag, size = 0x8, scoped, tag = 'scoped memory for tpu_custom_call.1']
    #allocation4 [shape = 's32[2]{0}', space=sflag, size = 0x8, scoped, tag = 'scoped memory for tpu_custom_call.1']
    #allocation5 [shape = 'u8[65536]{0}', space=vmem, size = 0x10000, scoped, tag = 'output window, operand 0']
    %8 = vsyncpa [#allocation3], 0
    %s9 = scalar_lea.sflag [#allocation3], 1
    %10 = vsyncpa %s9, 0
    %11 = vsyncpa [#allocation4], 0
    %s12 = scalar_lea.sflag [#allocation4], 1
    %13 = vsyncpa %s12, 0
    loop: start=0, step=1, limit=4
    $region2: #{tpu_custom_call.1} parent=1 // loop_pre_header
      _
    $region3: #{tpu_custom_call.1} parent=1 // loop_header
      %s15 = sphi 0, %s19
      %p16 = scmp.ge.s32.totalorder %s15, 4
      %s22 = sphi 0, %s34
      %s23 = sphi 0, %s30
      %s24 = sphi 0, %s22
      %s25 = sphi 0, %s23
      %s26 = sphi 0, %s24
      %s27 = sphi 0, %s25
      %s39 = sphi 0, %s41
      %s42 = sphi 0, %s39
      %s43 = sphi 0, %s42
      %s59 = sphi 0, %s43
      %s63 = sphi 0, %s63
      %s65 = sphi 0, %s63
      %s66 = sphi 0, %s65
      %s80 = sphi 0, %s66
      %s84 = sphi 0, %s84
      %s86 = sphi 0, %s84
      %s87 = sphi 0, %s86
      %s101 = sphi 0, %s87
      %s109 = sphi 0, %s111
      %s112 = sphi 0, %s109
      %s113 = sphi 0, %s112
      %s129 = sphi 0, %s113
    $region4: #{tpu_custom_call.1} parent=1 // loop_header_branch
      %18 = sbr.rel (%p16) target = $region8
    $region5: #{tpu_custom_call.1} parent=1 // loop_body
      %s20 = ssub.s32 %s15, 1
      %s21 = ssub.s32 %s15, 2
      %s28 = sadd.s32 1, %s23
      %p29 = scmp.ge.s32.totalorder %s28, 1
      %s30 = scalar_select %p29, 0, %s28
      %s31 = sadd.s32 1, %s22
      %s32 = scalar_select %p29, %s31, %s22
      %p33 = scmp.ge.s32.totalorder %s32, 2
      %s34 = scalar_select %p33, 0, %s32
      %s35 = ssub.s32 %s22, %s34
      %s36 = ssub.s32 %s23, %s30
      %s37 = sor.u32 %s35, %s36
      %p38 = scmp.eq.s32.totalorder %s37, 0
      %s40 = sadd.s32 %s39, 1
      %s41 = scalar_select %p38, %s39, %s40
      %p44 = pneg %p38
      %p45 = scmp.eq.s32.totalorder %s15, 1
      %p46 = por %p44, %p45
      %p47 = scmp.ne.s32.totalorder %s39, %s42
      %p48 = scmp.eq.s32.totalorder %s15, 0
      %p49 = por %p47, %p48
      %p50 = scmp.ne.s32.totalorder %s39, %s42
      %p51 = scmp.eq.s32.totalorder %s20, 1
      %p52 = por %p50, %p51
      %p53 = scmp.ne.s32.totalorder %s42, %s43
      %p54 = scmp.eq.s32.totalorder %s20, 0
      %p55 = por %p53, %p54
      %p56 = scmp.ne.s32.totalorder %s42, %s43
      %p57 = scmp.eq.s32.totalorder %s21, 1
      %p58 = por %p56, %p57
      %p60 = scmp.ne.s32.totalorder %s43, %s59
      %p61 = scmp.eq.s32.totalorder %s21, 0
      %p62 = por %p60, %p61
      %s64 = sadd.s32 %s63, 1
      %p67 = scmp.eq.s32.totalorder %s15, 1
      %p68 = scmp.ne.s32.totalorder %s63, %s65
      %p69 = scmp.eq.s32.totalorder %s15, 0
      %p70 = por %p68, %p69
      %p71 = scmp.ne.s32.totalorder %s63, %s65
      %p72 = scmp.eq.s32.totalorder %s20, 1
      %p73 = por %p71, %p72
      %p74 = scmp.ne.s32.totalorder %s65, %s66
      %p75 = scmp.eq.s32.totalorder %s20, 0
      %p76 = por %p74, %p75
      %p77 = scmp.ne.s32.totalorder %s65, %s66
      %p78 = scmp.eq.s32.totalorder %s21, 1
      %p79 = por %p77, %p78
      %p81 = scmp.ne.s32.totalorder %s66, %s80
      %p82 = scmp.eq.s32.totalorder %s21, 0
      %p83 = por %p81, %p82
      %s85 = sadd.s32 %s84, 1
      %p88 = scmp.eq.s32.totalorder %s15, 1
      %p89 = scmp.ne.s32.totalorder %s84, %s86
      %p90 = scmp.eq.s32.totalorder %s15, 0
      %p91 = por %p89, %p90
      %p92 = scmp.ne.s32.totalorder %s84, %s86
      %p93 = scmp.eq.s32.totalorder %s20, 1
      %p94 = por %p92, %p93
      %p95 = scmp.ne.s32.totalorder %s86, %s87
      %p96 = scmp.eq.s32.totalorder %s20, 0
      %p97 = por %p95, %p96
      %p98 = scmp.ne.s32.totalorder %s86, %s87
      %p99 = scmp.eq.s32.totalorder %s21, 1
      %p100 = por %p98, %p99
      %p102 = scmp.ne.s32.totalorder %s87, %s101
      %p103 = scmp.eq.s32.totalorder %s21, 0
      %p104 = por %p102, %p103
      %s105 = ssub.s32 %s22, %s34
      %s106 = ssub.s32 %s23, %s30
      %s107 = sor.u32 %s105, %s106
      %p108 = scmp.eq.s32.totalorder %s107, 0
      %s110 = sadd.s32 %s109, 1
      %s111 = scalar_select %p108, %s109, %s110
      %p114 = pneg %p108
      %p115 = scmp.eq.s32.totalorder %s15, 1
      %p116 = por %p114, %p115
      %p117 = scmp.ne.s32.totalorder %s109, %s112
      %p118 = scmp.eq.s32.totalorder %s15, 0
      %p119 = por %p117, %p118
      %p120 = scmp.ne.s32.totalorder %s109, %s112
      %p121 = scmp.eq.s32.totalorder %s20, 1
      %p122 = por %p120, %p121
      %p123 = scmp.ne.s32.totalorder %s112, %s113
      %p124 = scmp.eq.s32.totalorder %s20, 0
      %p125 = por %p123, %p124
      %p126 = scmp.ne.s32.totalorder %s112, %s113
      %p127 = scmp.eq.s32.totalorder %s21, 1
      %p128 = por %p126, %p127
      %p130 = scmp.ne.s32.totalorder %s113, %s129
      %p131 = scmp.eq.s32.totalorder %s21, 0
      %p132 = por %p130, %p131
      %p133 = scmp.le.s32.totalorder 1, %s15
      %p134 = scmp.lt.s32.totalorder %s15, 3
      %p135 = pnand %p133, %p134
      %p136 = pneg %p135
      // Predicated region
      $region9: #{tpu_custom_call.1} parent=5 // pred_check
        _
      $region10: #{tpu_custom_call.1} parent=5 // pred_check_branch
        %138 = sbr.rel (%p135) target = $region12
      $region11: #{tpu_custom_call.1} parent=5 // pred_region
        %s139 = ssub.s32 %s15, 1
        // Predicated region
        $region13: #{tpu_custom_call.1} parent=11 // pred_check
          %p140 = pneg %p76
        $region14: #{tpu_custom_call.1} parent=11 // pred_check_branch
          %142 = sbr.rel (%p140) target = $region16
        $region15: #{tpu_custom_call.1} parent=11 // pred_region
          _
        $region16: #{tpu_custom_call.1} parent=11 // pred_fallthru
          _
        // Predicated region
        $region17: #{tpu_custom_call.1} parent=11 // pred_check
          %p143 = pneg %p97
        $region18: #{tpu_custom_call.1} parent=11 // pred_check_branch
          %145 = sbr.rel (%p143) target = $region20
        $region19: #{tpu_custom_call.1} parent=11 // pred_region
          _
        $region20: #{tpu_custom_call.1} parent=11 // pred_fallthru
          _
      $region12: #{tpu_custom_call.1} parent=5 // pred_fallthru
        _
      %p146 = scmp.lt.s32.totalorder %s15, 2
      // Predicated region
      $region21: #{tpu_custom_call.1} parent=5 // pred_check
        %p147 = pneg %p146
      $region22: #{tpu_custom_call.1} parent=5 // pred_check_branch
        %149 = sbr.rel (%p147) target = $region24
      $region23: #{tpu_custom_call.1} parent=5 // pred_region
        // Predicated region
        $region25: #{tpu_custom_call.1} parent=23 // pred_check
          %p150 = pneg %p49
        $region26: #{tpu_custom_call.1} parent=23 // pred_check_branch
          %152 = sbr.rel (%p150) target = $region28
        $region27: #{tpu_custom_call.1} parent=23 // pred_region
          %s153 = sand.u32 %s39, 1
          %s154 = scalar_lea.sflag [#allocation3], %s153
          %s155 = sand.u32 %s39, 1
          %s156 = smul.addr %s155, 64
          %s157 = scalar_lea.vmem [#allocation2], %s156
          %s158 = smul.u32 2, %s23
          %s160 = ssub.s32 1024, 1024
          %161 = vsyncadd %s154, %s160
          %s162 = smul.addr %s22, 8
          %s163 = sadd.s32 %s158, %s162
          %s164 = smul.addr %s163, 128
          %s165 = scalar_lea.hbm %s0, %s164
          %s166 = sshll.u32 %s157, 4
          %s167 = int_to_ptr.vmem [resolvable:$true] %s166
          %172 = dma.hbm_to_vmem [thread:$0]  %s165, 1024, %s167, %s154, 256, 256, 16
        $region28: #{tpu_custom_call.1} parent=23 // pred_fallthru
          _
      $region24: #{tpu_custom_call.1} parent=5 // pred_fallthru
        _
      %p173 = scmp.le.s32.totalorder 1, %s15
      %p174 = scmp.lt.s32.totalorder %s15, 3
      %p175 = pnand %p173, %p174
      %p176 = pneg %p175
      // Predicated region
      $region29: #{tpu_custom_call.1} parent=5 // pred_check
        _
      $region30: #{tpu_custom_call.1} parent=5 // pred_check_branch
        %178 = sbr.rel (%p175) target = $region32
      $region31: #{tpu_custom_call.1} parent=5 // pred_region
        %s179 = ssub.s32 %s15, 1
        %s180 = sand.u32 %s42, 1
        %s181 = scalar_lea.sflag [#allocation3], %s180
        %s182 = sand.u32 %s42, 1
        %s183 = smul.addr %s182, 64
        %s184 = scalar_lea.vmem [#allocation2], %s183
        // Predicated region
        $region33: #{tpu_custom_call.1} parent=31 // pred_check
          %p185 = pneg %p55
        $region34: #{tpu_custom_call.1} parent=31 // pred_check_branch
          %187 = sbr.rel (%p185) target = $region36
        $region35: #{tpu_custom_call.1} parent=31 // pred_region
          %188 = dma.done %s181, 1024
        $region36: #{tpu_custom_call.1} parent=31 // pred_fallthru
          _
        %s189 = sand.u32 %s42, 1
        %s190 = scalar_lea.sflag [#allocation3], %s189
        %s191 = sand.u32 %s42, 1
        %s192 = smul.addr %s191, 64
        %s193 = scalar_lea.vmem [#allocation2], %s192
        %p194 = pneg %p55
        %p195 = pneg %p52
        %p196 = pneg %p76
        %p197 = pneg %p73
        %p198 = pneg %p97
        %p199 = pneg %p94
        %p200 = pneg %p125
        %p201 = pneg %p122
        %s202 = sand.u32 %s112, 1
        %s203 = scalar_lea.sflag [#allocation4], %s202
        %s204 = sand.u32 %s112, 1
        %s205 = smul.addr %s204, 64
        %s206 = scalar_lea.vmem [#allocation5], %s205
        %s207 = smul.u32 2, %s25
        %s208 = smul.u32 2, %s25
        %v210 = vld [vmem:[%s184] sm:$0xff]
        %v211 = vld [vmem:[%s184 + $0x8] sm:$0xff]
        %v212 = vld [vmem:[%s184 + $0x10] sm:$0xff]
        %v213 = vld [vmem:[%s184 + $0x18] sm:$0xff]
        %v214 = vld [vmem:[%s184 + $0x20] sm:$0xff]
        %v215 = vld [vmem:[%s184 + $0x28] sm:$0xff]
        %v216 = vld [vmem:[%s184 + $0x30] sm:$0xff]
        %v217 = vld [vmem:[%s184 + $0x38] sm:$0xff]
        %v218 = vpack.c.bf16 %v212, %v210
        %v219 = vpack.c.bf16 %v213, %v211
        %v220 = vpack.c.bf16 %v216, %v214
        %v221 = vpack.c.bf16 %v217, %v215
        %v222 = vld [vmem:[%s1] sm:$0xf]
        %v223 = vld [vmem:[%s1 + $0x4] sm:$0xf]
        %v224 = vld [vmem:[%s1 + $0x8] sm:$0xf]
        %v225 = vld [vmem:[%s1 + $0xc] sm:$0xf]
        %v226 = vld [vmem:[%s2] sm:$0xff]
        %v227 = vld [vmem:[%s2 + $0x8] sm:$0xff]
        %v228 = vld [vmem:[%s2 + $0x10] sm:$0xff]
        %v229 = vld [vmem:[%s2 + $0x18] sm:$0xff]
        %231 = vset.pattern.permute.xlu0 0
        %232 = vperm.xlu0 %231, %v226
        %v233 = vpop.permute.xlu0 %232
        %236 = vset.pattern.permute.xlu0 0
        %237 = vperm.xlu0 %236, %v227
        %v238 = vpop.permute.xlu0 %237
        %241 = vset.pattern.permute.xlu0 0
        %242 = vperm.xlu0 %241, %v228
        %v243 = vpop.permute.xlu0 %242
        %246 = vset.pattern.permute.xlu0 0
        %247 = vperm.xlu0 %246, %v229
        %v248 = vpop.permute.xlu0 %247
        %v254 = vunpack.c.l.b16 %v222
        %v255 = vunpack.c.l.b16 %v223
        %v256 = vunpack.c.l.b16 %v224
        %v257 = vunpack.c.l.b16 %v225
        %v258 = vpack.c.b16 %v255, %v254
        %v259 = vpack.c.b16 %v257, %v256
        %vm260 = vcmask 261120
        %v262 = vsel %vm260, %v258, 0
        %v265 = vsel %vm260, %v259, 0
        %267 = vmatprep.subr.bf16.mxu0 0
        %268 = vmatpush1.bf16.msra.mxu0 0
        %269 = vmatprep.subr.bf16.mxu0 0
        %270 = vmatpush1.bf16.msra.mxu0 0
        %271 = vmatprep.subr.bf16.mxu0 0
        %272 = vmatpush1.bf16.msra.mxu0 0
        %273 = vmatprep.subr.bf16.mxu0 0
        %274 = vmatpush1.bf16.msra.mxu0 0
        %275 = vmatprep.subr.bf16.mxu0 0
        %276 = vmatpush1.bf16.msra.mxu0 0
        %277 = vmatprep.subr.bf16.mxu0 0
        %278 = vmatpush1.bf16.msra.mxu0 0
        %279 = vmatprep.subr.bf16.mxu0 %v221
        %280 = vmatpush1.bf16.msra.mxu0 %v220
        %281 = vmatprep.subr.bf16.mxu0 %v219
        %282 = vmatpush1.bf16.msra.mxu0 %v218
        %283 = vmatprep.subr.bf16.mxu0 0
        %284 = vmatpush2.bf16.msra.mxu0 0
        %285 = vmatprep.subr.bf16.mxu0 0
        %286 = vmatpush2.bf16.msra.mxu0 0
        %287 = vmatprep.subr.bf16.mxu0 0
        %288 = vmatpush2.bf16.msra.mxu0 0
        %289 = vmatprep.subr.bf16.mxu0 0
        %290 = vmatpush2.bf16.msra.mxu0 0
        %291 = vmatprep.subr.bf16.mxu0 0
        %292 = vmatpush2.bf16.msra.mxu0 0
        %293 = vmatprep.subr.bf16.mxu0 0
        %294 = vmatpush2.bf16.msra.mxu0 0
        %295 = vmatprep.subr.bf16.mxu0 0
        %296 = vmatpush2.bf16.msra.mxu0 0
        %297 = vmatprep.subr.bf16.mxu0 0
        %298 = vmatpush2.bf16.msra.mxu0 0
        %299 = vmatprep.mubr.bf16.mxu0 0
        %300 = vmatmul.mubr.bf16.gmra.mxu0 %v262
        %v301 = vpop.f32.mrf.mxu0
        %v302 = vadd.f32 %v233, %v301
        %v303 = vpop.f32.mrf.mxu0
        %v304 = vadd.f32 %v233, %v303
        %v305 = vpop.f32.mrf.mxu0
        %v306 = vadd.f32 %v238, %v305
        %v307 = vpop.f32.mrf.mxu0
        %v308 = vadd.f32 %v238, %v307
        %309 = vmatprep.mubr.bf16.mxu0 0
        %310 = vmatmul.mubr.bf16.gmra.mxu0 %v265
        %v311 = vpop.f32.mrf.mxu0
        %v312 = vadd.f32 %v243, %v311
        %v313 = vpop.f32.mrf.mxu0
        %v314 = vadd.f32 %v243, %v313
        %v315 = vpop.f32.mrf.mxu0
        %v316 = vadd.f32 %v248, %v315
        %v317 = vpop.f32.mrf.mxu0
        %v318 = vadd.f32 %v248, %v317
        %319 = vdwg.mxu0
        %320 = vst [vmem:[%s206] sm:$0xff] %v302
        %321 = vst [vmem:[%s206 + $0x8] sm:$0xff] %v304
        %322 = vst [vmem:[%s206 + $0x10] sm:$0xff] %v306
        %323 = vst [vmem:[%s206 + $0x18] sm:$0xff] %v308
        %324 = vst [vmem:[%s206 + $0x20] sm:$0xff] %v312
        %325 = vst [vmem:[%s206 + $0x28] sm:$0xff] %v314
        %326 = vst [vmem:[%s206 + $0x30] sm:$0xff] %v316
        %327 = vst [vmem:[%s206 + $0x38] sm:$0xff] %v318
        %s328 = sand.u32 %s112, 1
        %s329 = scalar_lea.sflag [#allocation4], %s328
        %s330 = sand.u32 %s112, 1
        %s331 = smul.addr %s330, 64
        %s332 = scalar_lea.vmem [#allocation5], %s331
        // Predicated region
        $region37: #{tpu_custom_call.1} parent=31 // pred_check
          %p333 = pneg %p122
        $region38: #{tpu_custom_call.1} parent=31 // pred_check_branch
          %335 = sbr.rel (%p333) target = $region40
        $region39: #{tpu_custom_call.1} parent=31 // pred_region
          %s336 = smul.u32 2, %s25
          %s338 = ssub.s32 1024, 1024
          %339 = vsyncadd %s329, %s338
          %s340 = smul.addr %s24, 8
          %s341 = sadd.s32 %s336, %s340
          %s342 = smul.addr %s341, 128
          %s343 = scalar_lea.hbm %s3, %s342
          %s344 = sshll.u32 %s332, 4
          %s345 = int_to_ptr.vmem [resolvable:$true] %s344
          %350 = dma.vmem_to_hbm [thread:$0]  %s345, 1024, %s343, %s329, 256, 256, 16
        $region40: #{tpu_custom_call.1} parent=31 // pred_fallthru
          _
      $region32: #{tpu_custom_call.1} parent=5 // pred_fallthru
        _
      %p351 = scmp.le.s32.totalorder 2, %s15
      // Predicated region
      $region41: #{tpu_custom_call.1} parent=5 // pred_check
        %p352 = pneg %p351
      $region42: #{tpu_custom_call.1} parent=5 // pred_check_branch
        %354 = sbr.rel (%p352) target = $region44
      $region43: #{tpu_custom_call.1} parent=5 // pred_region
        %s355 = ssub.s32 %s15, 2
        // Predicated region
        $region45: #{tpu_custom_call.1} parent=43 // pred_check
          %p356 = pneg %p128
        $region46: #{tpu_custom_call.1} parent=43 // pred_check_branch
          %358 = sbr.rel (%p356) target = $region48
        $region47: #{tpu_custom_call.1} parent=43 // pred_region
          %s359 = sand.u32 %s113, 1
          %s360 = scalar_lea.sflag [#allocation4], %s359
          %s361 = sand.u32 %s113, 1
          %s362 = smul.addr %s361, 64
          %s363 = scalar_lea.vmem [#allocation5], %s362
          %364 = dma.done %s360, 1024
        $region48: #{tpu_custom_call.1} parent=43 // pred_fallthru
          _
      $region44: #{tpu_custom_call.1} parent=5 // pred_fallthru
        _
    $region6: #{tpu_custom_call.1} parent=1 // loop_footer
      %s19 = sadd.s32 1, %s15
    $region7: #{tpu_custom_call.1} parent=1 // loop_footer_branch
      %14 = sbr.rel target = $region3
    $region8: #{tpu_custom_call.1} parent=1 // loop_exit
      _
    %365 = vsyncpa [#allocation3], 1
    %s366 = scalar_lea.sflag [#allocation3], 1
    %367 = vsyncpa %s366, 1
    %368 = vsyncpa [#allocation4], 1
    %s369 = scalar_lea.sflag [#allocation4], 1
    %370 = vsyncpa %s369, 1

</llo_original>
